<compile_context>
chip_gen: v6e
topology: v6e:2x2x1
jax: 0.10.0
libtpu: 0.0.40
codegen_flags: <defaults>
</compile_context>

<pallas_src>
import jax
import jax.numpy as jnp
from jax.experimental import pallas as pl
from jax.experimental.pallas import tpu as pltpu


def _round_up(n, m):
    return ((n + m - 1) // m) * m


def _cdiv(a, b):
    return (a + b - 1) // b


def _discriminator_kernel(x_ref, w1_ref, b1_ref, w2_ref, b2_ref, o_ref):
    # Cast the activation tile to the compute dtype in VMEM (free under DMA/MXU); x stays f32
    # in HBM so the wrapper never writes and re-reads a casted copy.
    x = x_ref[...].astype(w1_ref.dtype)
    # Layer 1: Linear(input_size + 1, hidden).  K is a ragged contraction dim (e.g. 9);
    # Mosaic masks the padded lanes, so no HBM-side K padding is needed.
    h = jnp.dot(x, w1_ref[...], preferred_element_type=jnp.float32)
    h = jnp.maximum(h + b1_ref[...], 0.0)          # bias + ReLU(inplace) in f32 (VPU, v5e-safe)
    # Dropout(0.2): identity in eval / inference mode.
    # TODO(synk): training-mode dropout (pltpu.prng_seed + prng_random_bits mask, 1/(1-p) scale).
    h = h.astype(w2_ref.dtype)                     # single cast before matmul 2
    # Layer 2: Linear(hidden, out_classes).  Output keeps its real width C; the narrow masked
    # store is trivial compared to padding the class dim to 128 in HBM.
    out = jnp.dot(h, w2_ref[...], preferred_element_type=jnp.float32)
    o_ref[...] = (out + b2_ref[...]).astype(o_ref.dtype)


def prepare_params(w1, b1, w2, b2, *, compute_dtype=jnp.float32):
    """One-time parameter prep (hoisted out of the per-call forward path).

    Only the hidden dim is zero-padded to a lane multiple (128); padded w1 columns / b1 entries
    and padded w2 rows are zero, so padding is mathematically inert.  Input-feature and class
    dims keep their natural widths.
    """
    K, H = w1.shape
    Hw, C = w2.shape
    assert H == Hw and b1.shape == (1, H) and b2.shape == (1, C)
    Hp = _round_up(max(H, 128), 128)
    w1p = jnp.zeros((K, Hp), compute_dtype).at[:, :H].set(w1.astype(compute_dtype))
    b1p = jnp.zeros((1, Hp), jnp.float32).at[:, :H].set(b1.astype(jnp.float32))
    w2p = jnp.zeros((Hp, C), compute_dtype).at[:H, :].set(w2.astype(compute_dtype))
    b2p = b2.astype(jnp.float32)
    return w1p, b1p, w2p, b2p


def discriminator_forward(x, params, *, tile_b=2048):
    """x: (B, input_size+1) f32; params from prepare_params().  Returns (B, out_classes) f32."""
    w1p, b1p, w2p, b2p = params
    B, K = x.shape
    Kw, Hp = w1p.shape
    Hw, C = w2p.shape
    assert K == Kw and Hp == Hw and b1p.shape == (1, Hp) and b2p.shape == (1, C)

    # Even batch tiling: >=2 tiles whenever B > tile_b (keeps both v7x TensorCores busy),
    # 16-row alignment (packed bf16 sublane tile), minimal last-tile waste.
    n_tiles = max(1, _cdiv(B, tile_b))
    if B > tile_b:
        n_tiles = max(n_tiles, 2)
    tb = _round_up(_cdiv(B, n_tiles), 16)
    Bp = n_tiles * tb

    # Only a tiny batch remainder is ever padded in HBM; no K/C lane padding of activations.
    xin = x if Bp == B else jnp.zeros((Bp, K), x.dtype).at[:B, :].set(x)

    flops = 2 * Bp * (K * Hp + Hp * C)
    bytes_accessed = (xin.size * xin.dtype.itemsize
                      + Bp * C * 4
                      + w1p.size * w1p.dtype.itemsize + b1p.size * 4
                      + w2p.size * w2p.dtype.itemsize + b2p.size * 4)

    out = pl.pallas_call(
        _discriminator_kernel,
        out_shape=jax.ShapeDtypeStruct((Bp, C), jnp.float32),
        grid=(n_tiles,),
        in_specs=[
            pl.BlockSpec((tb, K), lambda i: (i, 0)),     # batch-tiled activations (pipelined)
            pl.BlockSpec((K, Hp), lambda i: (0, 0)),     # weights/biases stay resident in VMEM
            pl.BlockSpec((1, Hp), lambda i: (0, 0)),
            pl.BlockSpec((Hp, C), lambda i: (0, 0)),
            pl.BlockSpec((1, C), lambda i: (0, 0)),
        ],
        out_specs=pl.BlockSpec((tb, C), lambda i: (i, 0)),
        compiler_params=pltpu.CompilerParams(
            dimension_semantics=("parallel",),            # shard batch tiles across TCs (v7x)
        ),
        cost_estimate=pl.CostEstimate(
            flops=flops, transcendentals=0, bytes_accessed=bytes_accessed),
    )(xin, w1p, b1p, w2p, b2p)

    return out if Bp == B else out[:B]


def init_params(key, input_size, hidden_size=64, out_classes=2):
    """nn.Linear default init: uniform(-1/sqrt(fan_in), 1/sqrt(fan_in))."""
    in_feats = input_size + 1
    k1, k2, k3, k4 = jax.random.split(key, 4)
    bound1 = 1.0 / jnp.sqrt(in_feats)
    bound2 = 1.0 / jnp.sqrt(hidden_size)
    w1 = jax.random.uniform(k1, (in_feats, hidden_size), jnp.float32, -bound1, bound1)
    b1 = jax.random.uniform(k2, (1, hidden_size), jnp.float32, -bound1, bound1)
    w2 = jax.random.uniform(k3, (hidden_size, out_classes), jnp.float32, -bound2, bound2)
    b2 = jax.random.uniform(k4, (1, out_classes), jnp.float32, -bound2, bound2)
    return w1, b1, w2, b2


if __name__ == "__main__":
    key = jax.random.PRNGKey(0)
    kp, kx = jax.random.split(key)

    batch = 8
    input_size = 8          # classifier sees input_size + 1 = 9 features
    hidden_size = 64
    out_classes = 2

    w1, b1, w2, b2 = init_params(kp, input_size, hidden_size, out_classes)
    x = jax.random.normal(kx, (batch, input_size + 1), jnp.float32)

    # pure-JAX reference (dropout is identity in eval mode)
    ref = jnp.maximum(x @ w1 + b1, 0.0) @ w2 + b2

    # f32 compute path (default, faithful to the PyTorch module): tight check
    params_f32 = prepare_params(w1, b1, w2, b2, compute_dtype=jnp.float32)
    out_f32 = discriminator_forward(x, params_f32)
    out_f32 = jax.block_until_ready(out_f32)
    assert out_f32.shape == (batch, out_classes)
    assert jnp.allclose(out_f32, ref, atol=1e-5, rtol=1e-5)

    # bf16 compute path (opt-in, halves weight HBM traffic at scale): relaxed tolerance
    params_bf16 = prepare_params(w1, b1, w2, b2, compute_dtype=jnp.bfloat16)
    out_bf16 = discriminator_forward(x, params_bf16)
    out_bf16 = jax.block_until_ready(out_bf16)
    assert out_bf16.shape == (batch, out_classes)
    assert jnp.allclose(out_bf16, ref, atol=2e-2, rtol=2e-2)

    print("KERNEL_OK")
</pallas_src>

<mosaic_0001>
module attributes {stable_mosaic.version = 11 : i64} {
  func.func @_discriminator_kernel(%arg0: i32, %arg1: memref<16x9xf32, #tpu.memory_space<vmem>>, %arg2: memref<9x128xf32, #tpu.memory_space<vmem>>, %arg3: memref<1x128xf32, #tpu.memory_space<vmem>>, %arg4: memref<128x2xf32, #tpu.memory_space<vmem>>, %arg5: memref<1x2xf32, #tpu.memory_space<vmem>>, %arg6: memref<16x2xf32, #tpu.memory_space<vmem>>) attributes {dimension_semantics = [#tpu.dimension_semantics<parallel>], iteration_bounds = array<i64: 1>, scalar_prefetch = 0 : i64, scratch_operands = 0 : i64, tpu.core_type = #tpu.core_type<tc>, window_params = [{transform_indices = @transform_0, window_bounds = array<i64: 16, 9>}, {pipeline_mode = #tpu.pipeline_mode<synchronous>, transform_indices = @transform_1, window_bounds = array<i64: 9, 128>}, {pipeline_mode = #tpu.pipeline_mode<synchronous>, transform_indices = @transform_2, window_bounds = array<i64: 1, 128>}, {pipeline_mode = #tpu.pipeline_mode<synchronous>, transform_indices = @transform_3, window_bounds = array<i64: 128, 2>}, {pipeline_mode = #tpu.pipeline_mode<synchronous>, transform_indices = @transform_4, window_bounds = array<i64: 1, 2>}, {transform_indices = @transform_5, window_bounds = array<i64: 16, 2>}]} {
    %c0 = arith.constant 0 : index
    %c0_0 = arith.constant 0 : index
    %0 = vector.load %arg1[%c0, %c0_0] : memref<16x9xf32, #tpu.memory_space<vmem>>, vector<16x9xf32>
    %c0_1 = arith.constant 0 : index
    %c0_2 = arith.constant 0 : index
    %1 = vector.load %arg2[%c0_1, %c0_2] : memref<9x128xf32, #tpu.memory_space<vmem>>, vector<9x128xf32>
    %cst = arith.constant dense<0.000000e+00> : vector<16x128xf32>
    %2 = tpu.matmul %0, %1, %cst {dimension_numbers = #tpu.dot_dimension_numbers<[1], [0], [0], [1], [0, 0, 1, 1], [], []>} : vector<16x9xf32>, vector<9x128xf32>, vector<16x128xf32> -> vector<16x128xf32>
    %c0_3 = arith.constant 0 : index
    %c0_4 = arith.constant 0 : index
    %3 = vector.load %arg3[%c0_3, %c0_4] : memref<1x128xf32, #tpu.memory_space<vmem>>, vector<1x128xf32>
    %4 = vector.broadcast %3 : vector<1x128xf32> to vector<16x128xf32>
    %5 = arith.addf %2, %4 : vector<16x128xf32>
    %cst_5 = arith.constant 0.000000e+00 : f32
    %6 = vector.broadcast %cst_5 : f32 to vector<16x128xf32>
    %7 = arith.maximumf %5, %6 : vector<16x128xf32>
    %c0_6 = arith.constant 0 : index
    %c0_7 = arith.constant 0 : index
    %8 = vector.load %arg4[%c0_6, %c0_7] : memref<128x2xf32, #tpu.memory_space<vmem>>, vector<128x2xf32>
    %cst_8 = arith.constant dense<0.000000e+00> : vector<16x2xf32>
    %9 = tpu.matmul %7, %8, %cst_8 {dimension_numbers = #tpu.dot_dimension_numbers<[1], [0], [0], [1], [0, 0, 1, 1], [], []>} : vector<16x128xf32>, vector<128x2xf32>, vector<16x2xf32> -> vector<16x2xf32>
    %c0_9 = arith.constant 0 : index
    %c0_10 = arith.constant 0 : index
    %10 = vector.load %arg5[%c0_9, %c0_10] : memref<1x2xf32, #tpu.memory_space<vmem>>, vector<1x2xf32>
    %11 = vector.broadcast %10 : vector<1x2xf32> to vector<16x2xf32>
    %12 = arith.addf %9, %11 : vector<16x2xf32>
    %c0_11 = arith.constant 0 : index
    %c0_12 = arith.constant 0 : index
    %13 = vector.load %arg6[%c0_11, %c0_12] : memref<16x2xf32, #tpu.memory_space<vmem>>, vector<16x2xf32>
    tpu.vector_store %arg6[%c0_11, %c0_12], %12 {strides = array<i32>} : memref<16x2xf32, #tpu.memory_space<vmem>>, vector<16x2xf32>,
    return
  }
  func.func @transform_0(%arg0: i32) -> (i32, i32) {
    %c0_i32 = arith.constant 0 : i32
    %c0_i32_0 = arith.constant 0 : i32
    return %arg0, %c0_i32 : i32, i32
  }
  func.func @transform_1(%arg0: i32) -> (i32, i32) {
    %c0_i32 = arith.constant 0 : i32
    %c0_i32_0 = arith.constant 0 : i32
    %c0_i32_1 = arith.constant 0 : i32
    return %c0_i32, %c0_i32_0 : i32, i32
  }
  func.func @transform_2(%arg0: i32) -> (i32, i32) {
    %c0_i32 = arith.constant 0 : i32
    %c0_i32_0 = arith.constant 0 : i32
    %c0_i32_1 = arith.constant 0 : i32
    return %c0_i32, %c0_i32_0 : i32, i32
  }
  func.func @transform_3(%arg0: i32) -> (i32, i32) {
    %c0_i32 = arith.constant 0 : i32
    %c0_i32_0 = arith.constant 0 : i32
    %c0_i32_1 = arith.constant 0 : i32
    return %c0_i32, %c0_i32_0 : i32, i32
  }
  func.func @transform_4(%arg0: i32) -> (i32, i32) {
    %c0_i32 = arith.constant 0 : i32
    %c0_i32_0 = arith.constant 0 : i32
    %c0_i32_1 = arith.constant 0 : i32
    return %c0_i32, %c0_i32_0 : i32, i32
  }
  func.func @transform_5(%arg0: i32) -> (i32, i32) {
    %c0_i32 = arith.constant 0 : i32
    %c0_i32_0 = arith.constant 0 : i32
    return %arg0, %c0_i32 : i32, i32
  }
}

</mosaic_0001>

<llo_original>
// kernel: tpu_custom_call.1
$region0: #{tpu_custom_call.1}
  #allocation0 [shape = 'u32[]', space=smem, size = 0x4, offset = 0x4, fixed_abs, tag = 'smem constant byte address 0x4 - core index']
  #allocation1 [shape = 'u32[144,128]{1,0:T(1,128)}', space=vmem, size = 0x12000, scoped, tag = 'internal scratch']
  %s0 = inlined_call_operand.vmem [shape: f32[16,9], index: 0, kind: input, shape index: {}]
  %s1 = inlined_call_operand.vmem [shape: f32[9,128], index: 1, kind: input, shape index: {}]
  %s2 = inlined_call_operand.vmem [shape: f32[1,128], index: 2, kind: input, shape index: {}]
  %s3 = inlined_call_operand.vmem [shape: f32[128,2], index: 3, kind: input, shape index: {}]
  %s4 = inlined_call_operand.vmem [shape: f32[1,2], index: 4, kind: input, shape index: {}]
  %s5 = inlined_call_operand.vmem [shape: f32[16,2], index: 5, kind: output, shape index: {}]
  %s6 = sld [smem:[#allocation0]]
  $region30: #{tpu_custom_call.1} parent=0
    _
  %s8 = ssub.s32 1, %s6
  %s9 = scalar_select 0, %s8, %s6
  // Predicated region
  $region2: #{tpu_custom_call.1} parent=0 // pred_check
    _
  $region3: #{tpu_custom_call.1} parent=0 // pred_check_branch
    %11 = sbr.rel (0) target = $region5
  $region4: #{tpu_custom_call.1} parent=0 // pred_region
    _
  $region5: #{tpu_custom_call.1} parent=0 // pred_fallthru
    _
  // Predicated region
  $region6: #{tpu_custom_call.1} parent=0 // pred_check
    _
  $region7: #{tpu_custom_call.1} parent=0 // pred_check_branch
    %13 = sbr.rel (0) target = $region9
  $region8: #{tpu_custom_call.1} parent=0 // pred_region
    _
  $region9: #{tpu_custom_call.1} parent=0 // pred_fallthru
    _
  // Predicated region
  $region10: #{tpu_custom_call.1} parent=0 // pred_check
    _
  $region11: #{tpu_custom_call.1} parent=0 // pred_check_branch
    %15 = sbr.rel (0) target = $region13
  $region12: #{tpu_custom_call.1} parent=0 // pred_region
    _
  $region13: #{tpu_custom_call.1} parent=0 // pred_fallthru
    _
  // Predicated region
  $region14: #{tpu_custom_call.1} parent=0 // pred_check
    _
  $region15: #{tpu_custom_call.1} parent=0 // pred_check_branch
    %17 = sbr.rel (0) target = $region17
  $region16: #{tpu_custom_call.1} parent=0 // pred_region
    _
  $region17: #{tpu_custom_call.1} parent=0 // pred_fallthru
    _
  // Predicated region
  $region18: #{tpu_custom_call.1} parent=0 // pred_check
    _
  $region19: #{tpu_custom_call.1} parent=0 // pred_check_branch
    %19 = sbr.rel (0) target = $region21
  $region20: #{tpu_custom_call.1} parent=0 // pred_region
    _
  $region21: #{tpu_custom_call.1} parent=0 // pred_fallthru
    _
  %v20 = vld [vmem:[%s0] sm:$0xff]
  %v21 = vld [vmem:[%s0 + $0x8] sm:$0xff]
  %v22 = vld [vmem:[%s1] sm:$0xff]
  %v23 = vld [vmem:[%s1 + $0x8] sm:$0x1]
  %v24 = vld [vmem:[%s2] sm:$0x1]
  %v26 = vlaneseq
  %v27 = vshrl.u32 %v26, 7
  %v28 = vsub.s32 0, %v27
  %v29 = vrot.slane %v24, %v28
  %vm31 = vcmask 72704
  %v33 = vsel %vm31, %v20, 0
  %v36 = vsel %vm31, %v21, 0
  %vm38 = vcmask 1040384
  %v40 = vsel %vm38, %v23, 0
  %42 = vmatprep.subr.mxu0 0.0
  %43 = vmatpush1.msra.mxu0 0.0
  %44 = vmatprep.subr.mxu0 0.0
  %45 = vmatpush1.msra.mxu0 0.0
  %46 = vmatprep.subr.mxu0 0.0
  %47 = vmatpush1.msra.mxu0 0.0
  %48 = vmatprep.subr.mxu0 0.0
  %49 = vmatpush1.msra.mxu0 0.0
  %50 = vmatprep.subr.mxu0 0.0
  %51 = vmatpush1.msra.mxu0 0.0
  %52 = vmatprep.subr.mxu0 0.0
  %53 = vmatpush1.msra.mxu0 0.0
  %54 = vmatprep.subr.mxu0 0.0
  %55 = vmatpush1.msra.mxu0 0.0
  %56 = vmatprep.subr.mxu0 0.0
  %57 = vmatpush1.msra.mxu0 0.0
  %58 = vmatprep.subr.mxu0 0.0
  %59 = vmatpush1.msra.mxu0 0.0
  %60 = vmatprep.subr.mxu0 0.0
  %61 = vmatpush1.msra.mxu0 0.0
  %62 = vmatprep.subr.mxu0 0.0
  %63 = vmatpush1.msra.mxu0 0.0
  %64 = vmatprep.subr.mxu0 0.0
  %65 = vmatpush1.msra.mxu0 0.0
  %66 = vmatprep.subr.mxu0 0.0
  %67 = vmatpush1.msra.mxu0 0.0
  %68 = vmatprep.subr.mxu0 0.0
  %69 = vmatpush1.msra.mxu0 0.0
  %70 = vmatprep.subr.mxu0 0.0
  %71 = vmatpush1.msra.mxu0 %v40
  %72 = vmatprep.subr.mxu0 0.0
  %73 = vmatpush1.msra.mxu0 %v22
  %74 = vmatprep.subr.mxu0 0.0
  %75 = vmatpush2.msra.mxu0 0.0
  %76 = vmatprep.subr.mxu0 0.0
  %77 = vmatpush2.msra.mxu0 0.0
  %78 = vmatprep.subr.mxu0 0.0
  %79 = vmatpush2.msra.mxu0 0.0
  %80 = vmatprep.subr.mxu0 0.0
  %81 = vmatpush2.msra.mxu0 0.0
  %82 = vmatprep.subr.mxu0 0.0
  %83 = vmatpush2.msra.mxu0 0.0
  %84 = vmatprep.subr.mxu0 0.0
  %85 = vmatpush2.msra.mxu0 0.0
  %86 = vmatprep.subr.mxu0 0.0
  %87 = vmatpush2.msra.mxu0 0.0
  %88 = vmatprep.subr.mxu0 0.0
  %89 = vmatpush2.msra.mxu0 0.0
  %90 = vmatprep.subr.mxu0 0.0
  %91 = vmatpush2.msra.mxu0 0.0
  %92 = vmatprep.subr.mxu0 0.0
  %93 = vmatpush2.msra.mxu0 0.0
  %94 = vmatprep.subr.mxu0 0.0
  %95 = vmatpush2.msra.mxu0 0.0
  %96 = vmatprep.subr.mxu0 0.0
  %97 = vmatpush2.msra.mxu0 0.0
  %98 = vmatprep.subr.mxu0 0.0
  %99 = vmatpush2.msra.mxu0 0.0
  %100 = vmatprep.subr.mxu0 0.0
  %101 = vmatpush2.msra.mxu0 0.0
  %102 = vmatprep.subr.mxu0 0.0
  %103 = vmatpush2.msra.mxu0 0.0
  %104 = vmatprep.subr.mxu0 0.0
  %105 = vmatpush2.msra.mxu0 0.0
  %106 = vmatprep.mubr.f32.mxu0 0.0
  %107 = vmatmul.mubr.f32.gmra.mxu0 %v33
  %v108 = vpop.f32.mrf.mxu0
  %v109 = vadd.f32 %v29, %v108
  %v110 = vpop.f32.mrf.mxu0
  %111 = vmatprep.mubr.f32.mxu0 0.0
  %112 = vmatmul.mubr.f32.gmra.mxu0 %v36
  %v113 = vpop.f32.mrf.mxu0
  %v114 = vadd.f32 %v29, %v113
  %v115 = vpop.f32.mrf.mxu0
  %116 = vdwg.mxu0
  %v117 = vmax.f32 %v109, 0.0
  %v118 = vmax.f32 %v114, 0.0
  %v119 = vld [vmem:[%s3] sm:$0xff]
  %v120 = vld [vmem:[%s3 + $0x8] sm:$0xff]
  %v121 = vld [vmem:[%s3 + $0x10] sm:$0xff]
  %v122 = vld [vmem:[%s3 + $0x18] sm:$0xff]
  %v123 = vld [vmem:[%s3 + $0x20] sm:$0xff]
  %v124 = vld [vmem:[%s3 + $0x28] sm:$0xff]
  %v125 = vld [vmem:[%s3 + $0x30] sm:$0xff]
  %v126 = vld [vmem:[%s3 + $0x38] sm:$0xff]
  %v127 = vld [vmem:[%s3 + $0x40] sm:$0xff]
  %v128 = vld [vmem:[%s3 + $0x48] sm:$0xff]
  %v129 = vld [vmem:[%s3 + $0x50] sm:$0xff]
  %v130 = vld [vmem:[%s3 + $0x58] sm:$0xff]
  %v131 = vld [vmem:[%s3 + $0x60] sm:$0xff]
  %v132 = vld [vmem:[%s3 + $0x68] sm:$0xff]
  %v133 = vld [vmem:[%s3 + $0x70] sm:$0xff]
  %v134 = vld [vmem:[%s3 + $0x78] sm:$0xff]
  %v135 = vld [vmem:[%s4] sm:$0x1]
  %v137 = vlaneseq
  %v138 = vshrl.u32 %v137, 7
  %v139 = vsub.s32 0, %v138
  %v140 = vrot.slane %v135, %v139
  %142 = vmatprep.subr.mxu0 0.0
  %143 = vmatpush1.msra.mxu0 %v134
  %144 = vmatprep.subr.mxu0 0.0
  %145 = vmatpush1.msra.mxu0 %v133
  %146 = vmatprep.subr.mxu0 0.0
  %147 = vmatpush1.msra.mxu0 %v132
  %148 = vmatprep.subr.mxu0 0.0
  %149 = vmatpush1.msra.mxu0 %v131
  %150 = vmatprep.subr.mxu0 0.0
  %151 = vmatpush1.msra.mxu0 %v130
  %152 = vmatprep.subr.mxu0 0.0
  %153 = vmatpush1.msra.mxu0 %v129
  %154 = vmatprep.subr.mxu0 0.0
  %155 = vmatpush1.msra.mxu0 %v128
  %156 = vmatprep.subr.mxu0 0.0
  %157 = vmatpush1.msra.mxu0 %v127
  %158 = vmatprep.subr.mxu0 0.0
  %159 = vmatpush1.msra.mxu0 %v126
  %160 = vmatprep.subr.mxu0 0.0
  %161 = vmatpush1.msra.mxu0 %v125
  %162 = vmatprep.subr.mxu0 0.0
  %163 = vmatpush1.msra.mxu0 %v124
  %164 = vmatprep.subr.mxu0 0.0
  %165 = vmatpush1.msra.mxu0 %v123
  %166 = vmatprep.subr.mxu0 0.0
  %167 = vmatpush1.msra.mxu0 %v122
  %168 = vmatprep.subr.mxu0 0.0
  %169 = vmatpush1.msra.mxu0 %v121
  %170 = vmatprep.subr.mxu0 0.0
  %171 = vmatpush1.msra.mxu0 %v120
  %172 = vmatprep.subr.mxu0 0.0
  %173 = vmatpush1.msra.mxu0 %v119
  %174 = vmatprep.subr.mxu0 0.0
  %175 = vmatpush2.msra.mxu0 0.0
  %176 = vmatprep.subr.mxu0 0.0
  %177 = vmatpush2.msra.mxu0 0.0
  %178 = vmatprep.subr.mxu0 0.0
  %179 = vmatpush2.msra.mxu0 0.0
  %180 = vmatprep.subr.mxu0 0.0
  %181 = vmatpush2.msra.mxu0 0.0
  %182 = vmatprep.subr.mxu0 0.0
  %183 = vmatpush2.msra.mxu0 0.0
  %184 = vmatprep.subr.mxu0 0.0
  %185 = vmatpush2.msra.mxu0 0.0
  %186 = vmatprep.subr.mxu0 0.0
  %187 = vmatpush2.msra.mxu0 0.0
  %188 = vmatprep.subr.mxu0 0.0
  %189 = vmatpush2.msra.mxu0 0.0
  %190 = vmatprep.subr.mxu0 0.0
  %191 = vmatpush2.msra.mxu0 0.0
  %192 = vmatprep.subr.mxu0 0.0
  %193 = vmatpush2.msra.mxu0 0.0
  %194 = vmatprep.subr.mxu0 0.0
  %195 = vmatpush2.msra.mxu0 0.0
  %196 = vmatprep.subr.mxu0 0.0
  %197 = vmatpush2.msra.mxu0 0.0
  %198 = vmatprep.subr.mxu0 0.0
  %199 = vmatpush2.msra.mxu0 0.0
  %200 = vmatprep.subr.mxu0 0.0
  %201 = vmatpush2.msra.mxu0 0.0
  %202 = vmatprep.subr.mxu0 0.0
  %203 = vmatpush2.msra.mxu0 0.0
  %204 = vmatprep.subr.mxu0 0.0
  %205 = vmatpush2.msra.mxu0 0.0
  %206 = vmatprep.mubr.f32.mxu0 0.0
  %207 = vmatmul.mubr.f32.gmra.mxu0 %v117
  %v208 = vpop.f32.mrf.mxu0
  %v209 = vadd.f32 %v140, %v208
  %v210 = vpop.f32.mrf.mxu0
  %211 = vmatprep.mubr.f32.mxu0 0.0
  %212 = vmatmul.mubr.f32.gmra.mxu0 %v118
  %v213 = vpop.f32.mrf.mxu0
  %v214 = vadd.f32 %v140, %v213
  %v215 = vpop.f32.mrf.mxu0
  %216 = vdwg.mxu0
  %vm217 = vcmask 15360
  %218 = vst.msk [vmem:[%s5] sm:$0xff] %vm217, %v209
  %219 = vst.msk [vmem:[%s5 + $0x8] sm:$0xff] %vm217, %v214
  // Predicated region
  $region22: #{tpu_custom_call.1} parent=0 // pred_check
    _
  $region23: #{tpu_custom_call.1} parent=0 // pred_check_branch
    %221 = sbr.rel (0) target = $region25
  $region24: #{tpu_custom_call.1} parent=0 // pred_region
    _
  $region25: #{tpu_custom_call.1} parent=0 // pred_fallthru
    _
  // Predicated region
  $region26: #{tpu_custom_call.1} parent=0 // pred_check
    _
  $region27: #{tpu_custom_call.1} parent=0 // pred_check_branch
    %223 = sbr.rel (0) target = $region29
  $region28: #{tpu_custom_call.1} parent=0 // pred_region
    _
  $region29: #{tpu_custom_call.1} parent=0 // pred_fallthru
    _

</llo_original>
